<compile_context>
chip_gen: v7x
topology: tpu7x:2x2x1
jax: 0.10.0
libtpu: 0.0.40
codegen_flags: <defaults>
</compile_context>

<pallas_src>
from functools import partial

import jax
import jax.numpy as jnp
from jax.experimental import pallas as pl
from jax.experimental.pallas import tpu as pltpu


def _rup(x, m):
    return (x + m - 1) // m * m


# ----------------------------------------------------------------------------
# Pallas kernels
# ----------------------------------------------------------------------------
def _matmul_bn_stats_kernel(a_ref, b_ref, o_ref, sum_ref, sq_ref, acc_ref):
    """bf16 A @ bf16 B with f32 accumulation.  On the last K step, write the
    bf16 output tile plus that tile's per-column sum / sum-of-squares (f32)
    so BatchNorm batch statistics cost no extra pass over the activation."""
    k = pl.program_id(2)

    @pl.when(k == 0)
    def _():
        acc_ref[...] = jnp.zeros_like(acc_ref)

    acc_ref[...] += jnp.dot(a_ref[...], b_ref[...],
                            preferred_element_type=jnp.float32)

    @pl.when(k == pl.num_programs(2) - 1)
    def _():
        y = acc_ref[...]
        o_ref[...] = y.astype(o_ref.dtype)
        sum_ref[...] = jnp.sum(y, axis=0, keepdims=True)[None]
        sq_ref[...] = jnp.sum(y * y, axis=0, keepdims=True)[None]


def _matmul_bias_kernel(a_ref, b_ref, bias_ref, o_ref, acc_ref):
    """bf16 A @ bf16 B + f32 bias -> f32 output (detection-head convs)."""
    k = pl.program_id(2)

    @pl.when(k == 0)
    def _():
        acc_ref[...] = jnp.zeros_like(acc_ref)

    acc_ref[...] += jnp.dot(a_ref[...], b_ref[...],
                            preferred_element_type=jnp.float32)

    @pl.when(k == pl.num_programs(2) - 1)
    def _():
        o_ref[...] = (acc_ref[...] + bias_ref[...]).astype(o_ref.dtype)


def _bn_leaky_kernel(y_ref, scale_ref, shift_ref, o_ref):
    v = y_ref[...].astype(jnp.float32) * scale_ref[...] + shift_ref[...]
    o_ref[...] = jnp.where(v >= 0.0, v, 0.1 * v).astype(o_ref.dtype)


# ----------------------------------------------------------------------------
# Pallas-call wrappers (jitted per unique shape / tile combo)
# ----------------------------------------------------------------------------
@partial(jax.jit, static_argnums=(2, 3, 4))
def matmul_bn_stats(a, b, tm, tn, tk):
    """a:(Mp,Kp) bf16, b:(Kp,Np) bf16 -> (Y bf16 (Mp,Np),
    per-M-tile column sums / sums-of-squares f32 of shape (Mp//tm, 1, Np))."""
    Mp, Kp = a.shape
    _, Np = b.shape
    ni, nj, nk = Mp // tm, Np // tn, Kp // tk
    return pl.pallas_call(
        _matmul_bn_stats_kernel,
        out_shape=(jax.ShapeDtypeStruct((Mp, Np), jnp.bfloat16),
                   jax.ShapeDtypeStruct((ni, 1, Np), jnp.float32),
                   jax.ShapeDtypeStruct((ni, 1, Np), jnp.float32)),
        grid_spec=pltpu.PrefetchScalarGridSpec(
            num_scalar_prefetch=0,
            grid=(ni, nj, nk),
            in_specs=[
                pl.BlockSpec((tm, tk), lambda i, j, k: (i, k)),
                pl.BlockSpec((tk, tn), lambda i, j, k: (k, j)),
            ],
            out_specs=[
                pl.BlockSpec((tm, tn), lambda i, j, k: (i, j)),
                pl.BlockSpec((1, 1, tn), lambda i, j, k: (i, 0, j)),
                pl.BlockSpec((1, 1, tn), lambda i, j, k: (i, 0, j)),
            ],
            scratch_shapes=[pltpu.VMEM((tm, tn), jnp.float32)],
        ),
        compiler_params=pltpu.CompilerParams(
            dimension_semantics=("parallel", "parallel", "arbitrary")),
    )(a, b)


@partial(jax.jit, static_argnums=(3, 4, 5))
def matmul_bias(a, b, bias, tm, tn, tk):
    """a:(Mp,Kp) bf16, b:(Kp,Np) bf16, bias:(1,Np) f32 -> (Mp,Np) f32."""
    Mp, Kp = a.shape
    _, Np = b.shape
    ni, nj, nk = Mp // tm, Np // tn, Kp // tk
    return pl.pallas_call(
        _matmul_bias_kernel,
        out_shape=jax.ShapeDtypeStruct((Mp, Np), jnp.float32),
        grid_spec=pltpu.PrefetchScalarGridSpec(
            num_scalar_prefetch=0,
            grid=(ni, nj, nk),
            in_specs=[
                pl.BlockSpec((tm, tk), lambda i, j, k: (i, k)),
                pl.BlockSpec((tk, tn), lambda i, j, k: (k, j)),
                pl.BlockSpec((1, tn), lambda i, j, k: (0, j)),
            ],
            out_specs=pl.BlockSpec((tm, tn), lambda i, j, k: (i, j)),
            scratch_shapes=[pltpu.VMEM((tm, tn), jnp.float32)],
        ),
        compiler_params=pltpu.CompilerParams(
            dimension_semantics=("parallel", "parallel", "arbitrary")),
    )(a, b, bias)


@jax.jit
def bn_leaky(y, scale, shift):
    """y:(Mp,Np) bf16, scale/shift:(1,Np) f32; per-column affine +
    LeakyReLU(0.1) -> bf16.  Large, lane-dense (BM, full-N) tiles."""
    Mp, Np = y.shape
    bm = 8
    for cand in (1024, 512, 256, 128, 64, 32, 16, 8):
        if Mp % cand == 0:
            bm = cand
            break
    while bm > 8 and bm * Np > 512 * 1024:   # keep a block around <=1 MiB bf16
        bm //= 2
    return pl.pallas_call(
        _bn_leaky_kernel,
        out_shape=jax.ShapeDtypeStruct((Mp, Np), jnp.bfloat16),
        grid=(Mp // bm,),
        in_specs=[
            pl.BlockSpec((bm, Np), lambda i: (i, 0)),
            pl.BlockSpec((1, Np), lambda i: (0, 0)),
            pl.BlockSpec((1, Np), lambda i: (0, 0)),
        ],
        out_specs=pl.BlockSpec((bm, Np), lambda i: (i, 0)),
        compiler_params=pltpu.CompilerParams(
            dimension_semantics=("parallel",)),
    )(y, scale, shift)


# ----------------------------------------------------------------------------
# Conv = im2col (glue) + Pallas matmul (+ fused-stats BN / leaky epilogue)
# ----------------------------------------------------------------------------
def _im2col(x, k, stride, pad):
    """x: NHWC -> (N, Ho, Wo, k*k*Cin), patch order (kh, kw, cin)."""
    n, h, w, c = x.shape
    if k == 1 and stride == 1 and pad == 0:
        return x
    if pad > 0:
        x = jnp.pad(x, ((0, 0), (pad, pad), (pad, pad), (0, 0)))
    ho = (h + 2 * pad - k) // stride + 1
    wo = (w + 2 * pad - k) // stride + 1
    cols = []
    for ki in range(k):
        for kj in range(k):
            cols.append(x[:, ki:ki + stride * ho:stride,
                          kj:kj + stride * wo:stride, :])
    return jnp.concatenate(cols, axis=-1)


def _pick_tiles(M, K, cout):
    tm = min(256, _rup(M, 16))
    tn = min(256, _rup(cout, 128))
    np_ = _rup(cout, tn)
    if K <= 2304:                 # full-K weight panel stays VMEM resident
        kp = _rup(K, 16)
        tk = kp
    else:                         # block the reduction (v7x-safe)
        tk = 512
        kp = _rup(K, tk)
    mp = _rup(M, tm)
    return tm, tn, tk, mp, np_, kp


def conv_forward(x, p):
    """x: NHWC (bf16 internally).  Conv (+ BatchNorm with batch statistics +
    LeakyReLU(0.1) when bn_act).  Returns bf16 (bn_act) or f32 (head)."""
    k, s, pad = p["k"], p["stride"], p["pad"]
    w = p["w"]                                        # (Cout, Cin, k, k)
    cout = w.shape[0]
    A = _im2col(x, k, s, pad)                         # (N, Ho, Wo, k*k*Cin)
    n, ho, wo, kd = A.shape
    M = n * ho * wo
    A2 = A.reshape(M, kd).astype(jnp.bfloat16)
    B = jnp.transpose(w, (2, 3, 1, 0)).reshape(kd, cout).astype(jnp.bfloat16)

    tm, tn, tk, Mp, Np, Kp = _pick_tiles(M, kd, cout)
    Ap = jnp.pad(A2, ((0, Mp - M), (0, Kp - kd)))
    Bp = jnp.pad(B, ((0, Kp - kd), (0, Np - cout)))

    if p["bn_act"]:
        Yp, psum, psq = matmul_bn_stats(Ap, Bp, tm, tn, tk)
        csum = jnp.sum(psum[:, 0, :cout], axis=0)
        csq = jnp.sum(psq[:, 0, :cout], axis=0)
        mean = csum / M
        var = jnp.maximum(csq / M - mean * mean, 0.0)   # biased var (BN train)
        scale = p["gamma"] * jax.lax.rsqrt(var + 1e-5)
        shift = p["beta"] - mean * scale
        sp = jnp.pad(scale, (0, Np - cout)).reshape(1, Np)
        shp = jnp.pad(shift, (0, Np - cout)).reshape(1, Np)
        Yout = bn_leaky(Yp, sp, shp)                    # bf16
        out = Yout[:M, :cout]
    else:
        bp = jnp.pad(p["bias"], (0, Np - cout)).reshape(1, Np)
        Yp = matmul_bias(Ap, Bp, bp, tm, tn, tk)        # f32
        out = Yp[:M, :cout]
    return out.reshape(n, ho, wo, cout)


def resblock_forward(x, rb):
    for c1, c2 in rb["layers"]:
        y = conv_forward(conv_forward(x, c1), c2)
        x = x + y if rb["use_residual"] else y
    return x


def route_forward(x, rt):
    x = conv_forward(x, rt["c1"])
    x = conv_forward(x, rt["c2"])
    x = resblock_forward(x, rt["rb"])
    x = conv_forward(x, rt["c3"])
    return x


def scale_forward(x, sc, num_classes):
    y = conv_forward(x, sc["c1"])
    y = conv_forward(y, sc["c2"])            # (N, H, W, 3*(nc+5)), f32
    n, h, w, _ = y.shape
    y = y.reshape(n, h, w, 3, num_classes + 5)
    return jnp.transpose(y, (0, 3, 1, 2, 4))  # == torch permute(0,1,3,4,2)


def upsample2(x):                            # nearest-neighbor x2 (NHWC)
    return jnp.repeat(jnp.repeat(x, 2, axis=1), 2, axis=2)


# ----------------------------------------------------------------------------
# Deterministic parameter construction mirroring the nn.Module __init__
# ----------------------------------------------------------------------------
class KeyGen:
    def __init__(self, key):
        self.key = key
        self.i = 0

    def __call__(self):
        self.i += 1
        return jax.random.fold_in(self.key, self.i)


def make_conv(kg, cin, cout, k, stride=1, pad=0, bn_act=True):
    w = jax.random.normal(kg(), (cout, cin, k, k), jnp.float32) / float(
        (cin * k * k) ** 0.5)
    p = {"w": w, "k": k, "stride": stride, "pad": pad, "bn_act": bn_act}
    if bn_act:
        p["gamma"] = jnp.ones((cout,), jnp.float32)
        p["beta"] = jnp.zeros((cout,), jnp.float32)
    else:
        p["bias"] = 0.01 * jax.random.normal(kg(), (cout,), jnp.float32)
    return p


def make_resblock(kg, channels, use_residual=True, num_repeats=1):
    layers = []
    for _ in range(num_repeats):
        layers.append((make_conv(kg, channels, channels // 2, 1),
                       make_conv(kg, channels // 2, channels, 3, pad=1)))
    return {"layers": layers, "use_residual": use_residual}


def make_scale(kg, cin, num_classes):
    return {"c1": make_conv(kg, cin, 2 * cin, 3, pad=1),
            "c2": make_conv(kg, 2 * cin, (num_classes + 5) * 3, 1,
                            bn_act=False)}


def make_route(kg, cin, cmid):
    return {"c1": make_conv(kg, cin, cmid, 1),
            "c2": make_conv(kg, cmid, 2 * cmid, 3, pad=1),
            "rb": make_resblock(kg, 2 * cmid, use_residual=False,
                                num_repeats=1),
            "c3": make_conv(kg, 2 * cmid, cmid, 1)}


def init_yolov3(key, in_channels=3, num_classes=20):
    kg = KeyGen(key)
    depths = [64, 128, 256, 512, 1024]
    num_repeats = [1, 2, 8, 8, 4]
    up = [512, 256, 128]
    downs = [[make_conv(kg, in_channels, 32, 3, stride=1, pad=1),
              make_conv(kg, 32, 64, 3, stride=2, pad=1)]]
    for i in range(4):
        downs.append([make_conv(kg, depths[i], depths[i + 1], 3,
                                stride=2, pad=1)])
    stages = [make_resblock(kg, depths[i], True, num_repeats[i])
              for i in range(5)]
    scales = [make_scale(kg, 512, num_classes),
              make_scale(kg, 256, num_classes),
              make_scale(kg, 128, num_classes)]
    routes = [make_route(kg, 1024, 512),
              make_route(kg, 768, 256),
              make_route(kg, 384, 128)]
    upsample = [make_conv(kg, up[i], up[i + 1], 1) for i in range(2)]
    return {"downs": downs, "stages": stages, "scales": scales,
            "routes": routes, "up": upsample,
            "num_repeats": num_repeats, "num_classes": num_classes}


def yolov3_forward(params, x_nchw):
    # NCHW -> NHWC; internal activations are bf16, head outputs are f32.
    x = jnp.transpose(x_nchw, (0, 2, 3, 1)).astype(jnp.bfloat16)
    route_feats = []
    # ---------------------- Darknet-53 backbone ----------------------
    for i in range(5):
        for c in params["downs"][i]:
            x = conv_forward(x, c)
        x = resblock_forward(x, params["stages"][i])
        if params["num_repeats"][i] == 8:
            route_feats.append(x)
    # --------------------------- Head --------------------------------
    outs = []
    for i in range(2):
        x = route_forward(x, params["routes"][i])
        outs.append(scale_forward(x, params["scales"][i],
                                  params["num_classes"]))
        x = conv_forward(x, params["up"][i])
        x = upsample2(x)
        x = jnp.concatenate([x, route_feats[-i - 1]], axis=-1)
    x = route_forward(x, params["routes"][2])
    outs.append(scale_forward(x, params["scales"][2], params["num_classes"]))
    return outs


if __name__ == "__main__":
    # Spatial size must be a multiple of 32 (5 stride-2 downsamples).
    x = jax.random.normal(jax.random.PRNGKey(0), (2, 3, 32, 32), jnp.float32)
    params = init_yolov3(jax.random.PRNGKey(42), in_channels=3, num_classes=20)

    outs = yolov3_forward(params, x)
    for o in outs:
        jax.block_until_ready(o)

    assert outs[0].shape == (2, 3, 1, 1, 25), outs[0].shape
    assert outs[1].shape == (2, 3, 2, 2, 25), outs[1].shape
    assert outs[2].shape == (2, 3, 4, 4, 25), outs[2].shape
    assert all(bool(jnp.all(jnp.isfinite(o))) for o in outs)
    print("KERNEL_OK")
</pallas_src>

<mosaic_0001>
module attributes {stable_mosaic.version = 11 : i64} {
  func.func @_matmul_bn_stats_kernel(%arg0: i32, %arg1: i32, %arg2: i32, %arg3: memref<256x32xbf16, #tpu.memory_space<vmem>>, %arg4: memref<32x128xbf16, #tpu.memory_space<vmem>>, %arg5: memref<256x128xbf16, #tpu.memory_space<vmem>>, %arg6: memref<1x1x128xf32, #tpu.memory_space<vmem>>, %arg7: memref<1x1x128xf32, #tpu.memory_space<vmem>>, %arg8: memref<256x128xf32, #tpu.memory_space<vmem>>) attributes {dimension_semantics = [#tpu.dimension_semantics<parallel>, #tpu.dimension_semantics<parallel>, #tpu.dimension_semantics<arbitrary>], iteration_bounds = array<i64: 8, 1, 1>, scalar_prefetch = 0 : i64, scratch_operands = 1 : i64, tpu.core_type = #tpu.core_type<tc>, window_params = [{transform_indices = @transform_0, window_bounds = array<i64: 256, 32>}, {transform_indices = @transform_1, window_bounds = array<i64: 32, 128>}, {transform_indices = @transform_2, window_bounds = array<i64: 256, 128>}, {transform_indices = @transform_3, window_bounds = array<i64: 1, 1, 128>}, {transform_indices = @transform_4, window_bounds = array<i64: 1, 1, 128>}]} {
    %c0_i32 = arith.constant 0 : i32
    %0 = arith.cmpi eq, %arg2, %c0_i32 : i32
    %1 = arith.extui %0 : i1 to i32
    %c0_i32_0 = arith.constant 0 : i32
    %2 = arith.cmpi ne, %1, %c0_i32_0 : i32
    scf.if %2 {
      %cst_10 = arith.constant 0.000000e+00 : f32
      %12 = vector.broadcast %cst_10 : f32 to vector<256x128xf32>
      %c0_11 = arith.constant 0 : index
      %c0_12 = arith.constant 0 : index
      %13 = vector.load %arg8[%c0_11, %c0_12] : memref<256x128xf32, #tpu.memory_space<vmem>>, vector<256x128xf32>
      tpu.vector_store %arg8[%c0_11, %c0_12], %12 {strides = array<i32>} : memref<256x128xf32, #tpu.memory_space<vmem>>, vector<256x128xf32>,
    } else {
    }
    %c0 = arith.constant 0 : index
    %c0_1 = arith.constant 0 : index
    %3 = vector.load %arg8[%c0, %c0_1] : memref<256x128xf32, #tpu.memory_space<vmem>>, vector<256x128xf32>
    %c0_2 = arith.constant 0 : index
    %c0_3 = arith.constant 0 : index
    %4 = vector.load %arg3[%c0_2, %c0_3] : memref<256x32xbf16, #tpu.memory_space<vmem>>, vector<256x32xbf16>
    %c0_4 = arith.constant 0 : index
    %c0_5 = arith.constant 0 : index
    %5 = vector.load %arg4[%c0_4, %c0_5] : memref<32x128xbf16, #tpu.memory_space<vmem>>, vector<32x128xbf16>
    %cst = arith.constant dense<0.000000e+00> : vector<256x128xf32>
    %6 = tpu.matmul %4, %5, %cst {dimension_numbers = #tpu.dot_dimension_numbers<[1], [0], [0], [1], [0, 0, 1, 1], [], []>} : vector<256x32xbf16>, vector<32x128xbf16>, vector<256x128xf32> -> vector<256x128xf32>
    %7 = arith.addf %3, %6 : vector<256x128xf32>
    %c0_6 = arith.constant 0 : index
    %c0_7 = arith.constant 0 : index
    %8 = vector.load %arg8[%c0_6, %c0_7] : memref<256x128xf32, #tpu.memory_space<vmem>>, vector<256x128xf32>
    tpu.vector_store %arg8[%c0_6, %c0_7], %7 {strides = array<i32>} : memref<256x128xf32, #tpu.memory_space<vmem>>, vector<256x128xf32>,
    %c0_i32_8 = arith.constant 0 : i32
    %9 = arith.cmpi eq, %arg2, %c0_i32_8 : i32
    %10 = arith.extui %9 : i1 to i32
    %c0_i32_9 = arith.constant 0 : i32
    %11 = arith.cmpi ne, %10, %c0_i32_9 : i32
    scf.if %11 {
      %c0_10 = arith.constant 0 : index
      %c0_11 = arith.constant 0 : index
      %12 = vector.load %arg8[%c0_10, %c0_11] : memref<256x128xf32, #tpu.memory_space<vmem>>, vector<256x128xf32>
      %13 = arith.truncf %12 : vector<256x128xf32> to vector<256x128xbf16>
      %c0_12 = arith.constant 0 : index
      %c0_13 = arith.constant 0 : index
      %14 = vector.load %arg5[%c0_12, %c0_13] : memref<256x128xbf16, #tpu.memory_space<vmem>>, vector<256x128xbf16>
      tpu.vector_store %arg5[%c0_12, %c0_13], %13 {strides = array<i32>} : memref<256x128xbf16, #tpu.memory_space<vmem>>, vector<256x128xbf16>,
      %cst_14 = arith.constant dense<0.000000e+00> : vector<128xf32>
      %15 = vector.multi_reduction <add>, %12, %cst_14 [0] : vector<256x128xf32> to vector<128xf32>
      %16 = vector.shape_cast %15 : vector<128xf32> to vector<1x128xf32>
      %17 = vector.shape_cast %16 : vector<1x128xf32> to vector<1x1x128xf32>
      %c0_15 = arith.constant 0 : index
      %c0_16 = arith.constant 0 : index
      %c0_17 = arith.constant 0 : index
      %18 = vector.load %arg6[%c0_15, %c0_16, %c0_17] : memref<1x1x128xf32, #tpu.memory_space<vmem>>, vector<1x1x128xf32>
      tpu.vector_store %arg6[%c0_15, %c0_16, %c0_17], %17 {strides = array<i32>} : memref<1x1x128xf32, #tpu.memory_space<vmem>>, vector<1x1x128xf32>,
      %19 = arith.mulf %12, %12 : vector<256x128xf32>
      %cst_18 = arith.constant dense<0.000000e+00> : vector<128xf32>
      %20 = vector.multi_reduction <add>, %19, %cst_18 [0] : vector<256x128xf32> to vector<128xf32>
      %21 = vector.shape_cast %20 : vector<128xf32> to vector<1x128xf32>
      %22 = vector.shape_cast %21 : vector<1x128xf32> to vector<1x1x128xf32>
      %c0_19 = arith.constant 0 : index
      %c0_20 = arith.constant 0 : index
      %c0_21 = arith.constant 0 : index
      %23 = vector.load %arg7[%c0_19, %c0_20, %c0_21] : memref<1x1x128xf32, #tpu.memory_space<vmem>>, vector<1x1x128xf32>
      tpu.vector_store %arg7[%c0_19, %c0_20, %c0_21], %22 {strides = array<i32>} : memref<1x1x128xf32, #tpu.memory_space<vmem>>, vector<1x1x128xf32>,
    } else {
    }
    return
  }
  func.func @transform_0(%arg0: i32, %arg1: i32, %arg2: i32) -> (i32, i32) {
    %c0_i32 = arith.constant 0 : i32
    return %arg0, %arg2 : i32, i32
  }
  func.func @transform_1(%arg0: i32, %arg1: i32, %arg2: i32) -> (i32, i32) {
    %c0_i32 = arith.constant 0 : i32
    return %arg2, %arg1 : i32, i32
  }
  func.func @transform_2(%arg0: i32, %arg1: i32, %arg2: i32) -> (i32, i32) {
    %c0_i32 = arith.constant 0 : i32
    return %arg0, %arg1 : i32, i32
  }
  func.func @transform_3(%arg0: i32, %arg1: i32, %arg2: i32) -> (i32, i32, i32) {
    %c0_i32 = arith.constant 0 : i32
    %c0_i32_0 = arith.constant 0 : i32
    return %arg0, %c0_i32, %arg1 : i32, i32, i32
  }
  func.func @transform_4(%arg0: i32, %arg1: i32, %arg2: i32) -> (i32, i32, i32) {
    %c0_i32 = arith.constant 0 : i32
    %c0_i32_0 = arith.constant 0 : i32
    return %arg0, %c0_i32, %arg1 : i32, i32, i32
  }
}

</mosaic_0001>

<llo_original>
// kernel: matmul_bn_stats.1
$region0: #{matmul_bn_stats.1}
  #allocation0 [shape = 'u32[]', space=smem, size = 0x4, offset = 0x4, fixed_abs, tag = 'smem constant byte address 0x4 - core index']
  #allocation1 [shape = 'u32[144,128]{1,0:T(1,128)}', space=vmem, size = 0x12000, scoped, tag = 'internal scratch']
  #allocation2 [shape = 'f32[256,128]{1,0:T(8,128)}', space=vmem, size = 0x20000, scoped, tag = 'scratch operand']
  %s0 = inlined_call_operand.vmem [shape: bf16[2048,32], index: 0, kind: input, shape index: {}]
  %s1 = inlined_call_operand.vmem [shape: bf16[32,128], index: 1, kind: input, shape index: {}]
  %s2 = inlined_call_operand.hbm [shape: bf16[2048,128], index: 2, kind: output, shape index: {0}]
  %s3 = inlined_call_operand.hbm [shape: f32[8,1,128], index: 3, kind: output, shape index: {1}]
  %s4 = inlined_call_operand.hbm [shape: f32[8,1,128], index: 4, kind: output, shape index: {2}]
  %5 = xla_tuple %s2, %s3, %s4
  %s6 = sld [smem:[#allocation0]]
  $region65: #{matmul_bn_stats.1} parent=0
    _
  %s8 = ssub.s32 1, %s6
  %s9 = scalar_select 0, %s8, %s6
  $region1: #{matmul_bn_stats.1} parent=0
    #allocation3 [shape = 'u8[131072]{0}', space=vmem, size = 0x20000, scoped, tag = 'output window, operand 0']
    #allocation4 [shape = 's32[2]{0}', space=sflag, size = 0x8, scoped, tag = 'scoped memory for matmul_bn_stats.1']
    #allocation5 [shape = 'u8[1024]{0}', space=vmem, size = 0x400, scoped, tag = 'output window, operand 1']
    #allocation6 [shape = 's32[2]{0}', space=sflag, size = 0x8, scoped, tag = 'scoped memory for matmul_bn_stats.1']
    #allocation7 [shape = 'u8[1024]{0}', space=vmem, size = 0x400, scoped, tag = 'output window, operand 2']
    %10 = vsyncpa [#allocation4], 0
    %s11 = scalar_lea.sflag [#allocation4], 1
    %12 = vsyncpa %s11, 0
    %13 = vsyncpa [#allocation6], 0
    %s14 = scalar_lea.sflag [#allocation6], 1
    %15 = vsyncpa %s14, 0
    loop: start=0, step=1, limit=10
    $region2: #{matmul_bn_stats.1} parent=1 // loop_pre_header
      _
    $region3: #{matmul_bn_stats.1} parent=1 // loop_header
      %s17 = sphi 0, %s21
      %p18 = scmp.ge.s32.totalorder %s17, 10
      %s24 = sphi 0, %s43
      %s25 = sphi 0, %s39
      %s26 = sphi 0, %s35
      %s27 = sphi 0, %s24
      %s28 = sphi 0, %s25
      %s29 = sphi 0, %s26
      %s30 = sphi 0, %s27
      %s31 = sphi 0, %s28
      %s32 = sphi 0, %s29
      %s48 = sphi 0, %s50
      %s51 = sphi 0, %s48
      %s52 = sphi 0, %s51
      %s68 = sphi 0, %s52
      %s76 = sphi 0, %s78
      %s79 = sphi 0, %s76
      %s80 = sphi 0, %s79
      %s96 = sphi 0, %s80
      %s104 = sphi 0, %s106
      %s107 = sphi 0, %s104
      %s108 = sphi 0, %s107
      %s124 = sphi 0, %s108
      %s132 = sphi 0, %s134
      %s135 = sphi 0, %s132
      %s136 = sphi 0, %s135
      %s152 = sphi 0, %s136
      %s160 = sphi 0, %s162
      %s163 = sphi 0, %s160
      %s164 = sphi 0, %s163
      %s180 = sphi 0, %s164
    $region4: #{matmul_bn_stats.1} parent=1 // loop_header_branch
      %20 = sbr.rel (%p18) target = $region8
    $region5: #{matmul_bn_stats.1} parent=1 // loop_body
      %s22 = ssub.s32 %s17, 1
      %s23 = ssub.s32 %s17, 2
      %s33 = sadd.s32 1, %s26
      %p34 = scmp.ge.s32.totalorder %s33, 1
      %s35 = scalar_select %p34, 0, %s33
      %s36 = sadd.s32 1, %s25
      %s37 = scalar_select %p34, %s36, %s25
      %p38 = scmp.ge.s32.totalorder %s37, 1
      %s39 = scalar_select %p38, 0, %s37
      %s40 = sadd.s32 1, %s24
      %s41 = scalar_select %p38, %s40, %s24
      %p42 = scmp.ge.s32.totalorder %s41, 8
      %s43 = scalar_select %p42, 0, %s41
      %s44 = ssub.s32 %s24, %s43
      %s45 = ssub.s32 %s26, %s35
      %s46 = sor.u32 %s44, %s45
      %p47 = scmp.eq.s32.totalorder %s46, 0
      %s49 = sadd.s32 %s48, 1
      %s50 = scalar_select %p47, %s48, %s49
      %p53 = pneg %p47
      %p54 = scmp.eq.s32.totalorder %s17, 7
      %p55 = por %p53, %p54
      %p56 = scmp.ne.s32.totalorder %s48, %s51
      %p57 = scmp.eq.s32.totalorder %s17, 0
      %p58 = por %p56, %p57
      %p59 = scmp.ne.s32.totalorder %s48, %s51
      %p60 = scmp.eq.s32.totalorder %s22, 7
      %p61 = por %p59, %p60
      %p62 = scmp.ne.s32.totalorder %s51, %s52
      %p63 = scmp.eq.s32.totalorder %s22, 0
      %p64 = por %p62, %p63
      %p65 = scmp.ne.s32.totalorder %s51, %s52
      %p66 = scmp.eq.s32.totalorder %s23, 7
      %p67 = por %p65, %p66
      %p69 = scmp.ne.s32.totalorder %s52, %s68
      %p70 = scmp.eq.s32.totalorder %s23, 0
      %p71 = por %p69, %p70
      %s72 = ssub.s32 %s26, %s35
      %s73 = ssub.s32 %s25, %s39
      %s74 = sor.u32 %s72, %s73
      %p75 = scmp.eq.s32.totalorder %s74, 0
      %s77 = sadd.s32 %s76, 1
      %s78 = scalar_select %p75, %s76, %s77
      %p81 = pneg %p75
      %p82 = scmp.eq.s32.totalorder %s17, 7
      %p83 = por %p81, %p82
      %p84 = scmp.ne.s32.totalorder %s76, %s79
      %p85 = scmp.eq.s32.totalorder %s17, 0
      %p86 = por %p84, %p85
      %p87 = scmp.ne.s32.totalorder %s76, %s79
      %p88 = scmp.eq.s32.totalorder %s22, 7
      %p89 = por %p87, %p88
      %p90 = scmp.ne.s32.totalorder %s79, %s80
      %p91 = scmp.eq.s32.totalorder %s22, 0
      %p92 = por %p90, %p91
      %p93 = scmp.ne.s32.totalorder %s79, %s80
      %p94 = scmp.eq.s32.totalorder %s23, 7
      %p95 = por %p93, %p94
      %p97 = scmp.ne.s32.totalorder %s80, %s96
      %p98 = scmp.eq.s32.totalorder %s23, 0
      %p99 = por %p97, %p98
      %s100 = ssub.s32 %s24, %s43
      %s101 = ssub.s32 %s25, %s39
      %s102 = sor.u32 %s100, %s101
      %p103 = scmp.eq.s32.totalorder %s102, 0
      %s105 = sadd.s32 %s104, 1
      %s106 = scalar_select %p103, %s104, %s105
      %p109 = pneg %p103
      %p110 = scmp.eq.s32.totalorder %s17, 7
      %p111 = por %p109, %p110
      %p112 = scmp.ne.s32.totalorder %s104, %s107
      %p113 = scmp.eq.s32.totalorder %s17, 0
      %p114 = por %p112, %p113
      %p115 = scmp.ne.s32.totalorder %s104, %s107
      %p116 = scmp.eq.s32.totalorder %s22, 7
      %p117 = por %p115, %p116
      %p118 = scmp.ne.s32.totalorder %s107, %s108
      %p119 = scmp.eq.s32.totalorder %s22, 0
      %p120 = por %p118, %p119
      %p121 = scmp.ne.s32.totalorder %s107, %s108
      %p122 = scmp.eq.s32.totalorder %s23, 7
      %p123 = por %p121, %p122
      %p125 = scmp.ne.s32.totalorder %s108, %s124
      %p126 = scmp.eq.s32.totalorder %s23, 0
      %p127 = por %p125, %p126
      %s128 = ssub.s32 %s24, %s43
      %s129 = ssub.s32 %s25, %s39
      %s130 = sor.u32 %s128, %s129
      %p131 = scmp.eq.s32.totalorder %s130, 0
      %s133 = sadd.s32 %s132, 1
      %s134 = scalar_select %p131, %s132, %s133
      %p137 = pneg %p131
      %p138 = scmp.eq.s32.totalorder %s17, 7
      %p139 = por %p137, %p138
      %p140 = scmp.ne.s32.totalorder %s132, %s135
      %p141 = scmp.eq.s32.totalorder %s17, 0
      %p142 = por %p140, %p141
      %p143 = scmp.ne.s32.totalorder %s132, %s135
      %p144 = scmp.eq.s32.totalorder %s22, 7
      %p145 = por %p143, %p144
      %p146 = scmp.ne.s32.totalorder %s135, %s136
      %p147 = scmp.eq.s32.totalorder %s22, 0
      %p148 = por %p146, %p147
      %p149 = scmp.ne.s32.totalorder %s135, %s136
      %p150 = scmp.eq.s32.totalorder %s23, 7
      %p151 = por %p149, %p150
      %p153 = scmp.ne.s32.totalorder %s136, %s152
      %p154 = scmp.eq.s32.totalorder %s23, 0
      %p155 = por %p153, %p154
      %s156 = ssub.s32 %s24, %s43
      %s157 = ssub.s32 %s25, %s39
      %s158 = sor.u32 %s156, %s157
      %p159 = scmp.eq.s32.totalorder %s158, 0
      %s161 = sadd.s32 %s160, 1
      %s162 = scalar_select %p159, %s160, %s161
      %p165 = pneg %p159
      %p166 = scmp.eq.s32.totalorder %s17, 7
      %p167 = por %p165, %p166
      %p168 = scmp.ne.s32.totalorder %s160, %s163
      %p169 = scmp.eq.s32.totalorder %s17, 0
      %p170 = por %p168, %p169
      %p171 = scmp.ne.s32.totalorder %s160, %s163
      %p172 = scmp.eq.s32.totalorder %s22, 7
      %p173 = por %p171, %p172
      %p174 = scmp.ne.s32.totalorder %s163, %s164
      %p175 = scmp.eq.s32.totalorder %s22, 0
      %p176 = por %p174, %p175
      %p177 = scmp.ne.s32.totalorder %s163, %s164
      %p178 = scmp.eq.s32.totalorder %s23, 7
      %p179 = por %p177, %p178
      %p181 = scmp.ne.s32.totalorder %s164, %s180
      %p182 = scmp.eq.s32.totalorder %s23, 0
      %p183 = por %p181, %p182
      %p184 = scmp.le.s32.totalorder 1, %s17
      %p185 = scmp.lt.s32.totalorder %s17, 9
      %p186 = pnand %p184, %p185
      %p187 = pneg %p186
      // Predicated region
      $region9: #{matmul_bn_stats.1} parent=5 // pred_check
        _
      $region10: #{matmul_bn_stats.1} parent=5 // pred_check_branch
        %189 = sbr.rel (%p186) target = $region12
      $region11: #{matmul_bn_stats.1} parent=5 // pred_region
        %s190 = ssub.s32 %s17, 1
        // Predicated region
        $region13: #{matmul_bn_stats.1} parent=11 // pred_check
          %p191 = pneg %p92
        $region14: #{matmul_bn_stats.1} parent=11 // pred_check_branch
          %193 = sbr.rel (%p191) target = $region16
        $region15: #{matmul_bn_stats.1} parent=11 // pred_region
          %s194 = smul.u32 4, %s29
          %p195 = scmp.lt.s32.totalorder %s194, 3
          %s196 = scalar_select %p195, %s194, 3
          %p197 = scmp.lt.s32.totalorder %s28, 0
          %s198 = scalar_select %p197, %s28, 0
          %s199 = sadd.s32 %s198, %s196
          %s200 = smul.addr %s199, 4
          %s201 = scalar_lea.vmem %s1, %s200
          %s202 = smul.u32 4, %s29
        $region16: #{matmul_bn_stats.1} parent=11 // pred_fallthru
          _
      $region12: #{matmul_bn_stats.1} parent=5 // pred_fallthru
        _
      %p203 = scmp.lt.s32.totalorder %s17, 8
      // Predicated region
      $region17: #{matmul_bn_stats.1} parent=5 // pred_check
        %p204 = pneg %p203
      $region18: #{matmul_bn_stats.1} parent=5 // pred_check_branch
        %206 = sbr.rel (%p204) target = $region20
      $region19: #{matmul_bn_stats.1} parent=5 // pred_region
        // Predicated region
        $region21: #{matmul_bn_stats.1} parent=19 // pred_check
          %p207 = pneg %p58
        $region22: #{matmul_bn_stats.1} parent=19 // pred_check_branch
          %209 = sbr.rel (%p207) target = $region24
        $region23: #{matmul_bn_stats.1} parent=19 // pred_region
          %s210 = smul.u32 32, %s24
          %p211 = scmp.lt.s32.totalorder %s210, 255
          %s212 = scalar_select %p211, %s210, 255
          %p213 = scmp.lt.s32.totalorder %s26, 0
          %s214 = scalar_select %p213, %s26, 0
          %s215 = sadd.s32 %s214, %s212
          %s216 = smul.addr %s215, 4
          %s217 = scalar_lea.vmem %s0, %s216
          %s218 = smul.u32 32, %s24
        $region24: #{matmul_bn_stats.1} parent=19 // pred_fallthru
          _
      $region20: #{matmul_bn_stats.1} parent=5 // pred_fallthru
        _
      %p219 = scmp.le.s32.totalorder 1, %s17
      %p220 = scmp.lt.s32.totalorder %s17, 9
      %p221 = pnand %p219, %p220
      %p222 = pneg %p221
      // Predicated region
      $region25: #{matmul_bn_stats.1} parent=5 // pred_check
        _
      $region26: #{matmul_bn_stats.1} parent=5 // pred_check_branch
        %224 = sbr.rel (%p221) target = $region28
      $region27: #{matmul_bn_stats.1} parent=5 // pred_region
        %s225 = ssub.s32 %s17, 1
        %s226 = smul.u32 32, %s27
        %p227 = scmp.lt.s32.totalorder %s226, 255
        %s228 = scalar_select %p227, %s226, 255
        %p229 = scmp.lt.s32.totalorder %s29, 0
        %s230 = scalar_select %p229, %s29, 0
        %s231 = sadd.s32 %s230, %s228
        %s232 = smul.addr %s231, 4
        %s233 = scalar_lea.vmem %s0, %s232
        %p234 = pneg %p64
        %p235 = pneg %p61
        %s236 = smul.u32 4, %s29
        %p237 = scmp.lt.s32.totalorder %s236, 3
        %s238 = scalar_select %p237, %s236, 3
        %p239 = scmp.lt.s32.totalorder %s28, 0
        %s240 = scalar_select %p239, %s28, 0
        %s241 = sadd.s32 %s240, %s238
        %s242 = smul.addr %s241, 4
        %s243 = scalar_lea.vmem %s1, %s242
        %p244 = pneg %p92
        %p245 = pneg %p89
        %p246 = pneg %p120
        %p247 = pneg %p117
        %s248 = sand.u32 %s107, 1
        %s249 = scalar_lea.sflag [#allocation4], %s248
        %s250 = sand.u32 %s107, 1
        %s251 = smul.addr %s250, 128
        %s252 = scalar_lea.vmem [#allocation3], %s251
        %p253 = pneg %p148
        %p254 = pneg %p145
        %s255 = sand.u32 %s22, 1
        %s256 = scalar_lea.sflag [#allocation6], %s255
        %s257 = sand.u32 %s135, 1
        %s258 = scalar_lea.vmem [#allocation5], %s257
        %p259 = pneg %p176
        %p260 = pneg %p173
        %s261 = sand.u32 %s22, 1
        %s262 = scalar_lea.sflag [#allocation6], %s261
        %s263 = sand.u32 %s163, 1
        %s264 = scalar_lea.vmem [#allocation7], %s263
        %s265 = smul.u32 32, %s27
        %p266 = scmp.lt.s32.totalorder %s265, 255
        %s267 = scalar_select %p266, %s265, 255
        %p268 = scmp.lt.s32.totalorder %s29, 0
        %s269 = scalar_select %p268, %s29, 0
        %s270 = sadd.s32 %s269, %s267
        %s271 = smul.addr %s270, 4
        %s272 = scalar_lea.vmem %s0, %s271
        %s273 = smul.u32 32, %s27
        %s274 = smul.u32 4, %s29
        %p275 = scmp.lt.s32.totalorder %s274, 3
        %s276 = scalar_select %p275, %s274, 3
        %p277 = scmp.lt.s32.totalorder %s28, 0
        %s278 = scalar_select %p277, %s28, 0
        %s279 = sadd.s32 %s278, %s276
        %s280 = smul.addr %s279, 4
        %s281 = scalar_lea.vmem %s1, %s280
        %s282 = smul.u32 4, %s29
        %s283 = smul.u32 32, %s27
        %p285 = scmp.eq.s32.totalorder %s29, 0
        // Predicated region
        $region29: #{matmul_bn_stats.1} parent=27 // pred_check
          %p286 = pneg %p285
        $region30: #{matmul_bn_stats.1} parent=27 // pred_check_branch
          %288 = sbr.rel (%p286) target = $region32
        $region31: #{matmul_bn_stats.1} parent=27 // pred_region
          %289 = vst [vmem:[#allocation2] sm:$0xff] 0.0
          %290 = vst [vmem:[#allocation2 + $0x8] sm:$0xff] 0.0
          %291 = vst [vmem:[#allocation2 + $0x10] sm:$0xff] 0.0
          %292 = vst [vmem:[#allocation2 + $0x18] sm:$0xff] 0.0
          %293 = vst [vmem:[#allocation2 + $0x20] sm:$0xff] 0.0
          %294 = vst [vmem:[#allocation2 + $0x28] sm:$0xff] 0.0
          %295 = vst [vmem:[#allocation2 + $0x30] sm:$0xff] 0.0
          %296 = vst [vmem:[#allocation2 + $0x38] sm:$0xff] 0.0
          %297 = vst [vmem:[#allocation2 + $0x40] sm:$0xff] 0.0
          %298 = vst [vmem:[#allocation2 + $0x48] sm:$0xff] 0.0
          %299 = vst [vmem:[#allocation2 + $0x50] sm:$0xff] 0.0
          %300 = vst [vmem:[#allocation2 + $0x58] sm:$0xff] 0.0
          %301 = vst [vmem:[#allocation2 + $0x60] sm:$0xff] 0.0
          %302 = vst [vmem:[#allocation2 + $0x68] sm:$0xff] 0.0
          %303 = vst [vmem:[#allocation2 + $0x70] sm:$0xff] 0.0
          %304 = vst [vmem:[#allocation2 + $0x78] sm:$0xff] 0.0
          %305 = vst [vmem:[#allocation2 + $0x80] sm:$0xff] 0.0
          %306 = vst [vmem:[#allocation2 + $0x88] sm:$0xff] 0.0
          %307 = vst [vmem:[#allocation2 + $0x90] sm:$0xff] 0.0
          %308 = vst [vmem:[#allocation2 + $0x98] sm:$0xff] 0.0
          %309 = vst [vmem:[#allocation2 + $0xa0] sm:$0xff] 0.0
          %310 = vst [vmem:[#allocation2 + $0xa8] sm:$0xff] 0.0
          %311 = vst [vmem:[#allocation2 + $0xb0] sm:$0xff] 0.0
          %312 = vst [vmem:[#allocation2 + $0xb8] sm:$0xff] 0.0
          %313 = vst [vmem:[#allocation2 + $0xc0] sm:$0xff] 0.0
          %314 = vst [vmem:[#allocation2 + $0xc8] sm:$0xff] 0.0
          %315 = vst [vmem:[#allocation2 + $0xd0] sm:$0xff] 0.0
          %316 = vst [vmem:[#allocation2 + $0xd8] sm:$0xff] 0.0
          %317 = vst [vmem:[#allocation2 + $0xe0] sm:$0xff] 0.0
          %318 = vst [vmem:[#allocation2 + $0xe8] sm:$0xff] 0.0
          %319 = vst [vmem:[#allocation2 + $0xf0] sm:$0xff] 0.0
          %320 = vst [vmem:[#allocation2 + $0xf8] sm:$0xff] 0.0
        $region32: #{matmul_bn_stats.1} parent=27 // pred_fallthru
          _
        %v321 = vld [vmem:[#allocation2] sm:$0xff]
        %v322 = vld [vmem:[#allocation2 + $0x8] sm:$0xff]
        %v323 = vld [vmem:[#allocation2 + $0x10] sm:$0xff]
        %v324 = vld [vmem:[#allocation2 + $0x18] sm:$0xff]
        %v325 = vld [vmem:[#allocation2 + $0x20] sm:$0xff]
        %v326 = vld [vmem:[#allocation2 + $0x28] sm:$0xff]
        %v327 = vld [vmem:[#allocation2 + $0x30] sm:$0xff]
        %v328 = vld [vmem:[#allocation2 + $0x38] sm:$0xff]
        %v329 = vld [vmem:[#allocation2 + $0x40] sm:$0xff]
        %v330 = vld [vmem:[#allocation2 + $0x48] sm:$0xff]
        %v331 = vld [vmem:[#allocation2 + $0x50] sm:$0xff]
        %v332 = vld [vmem:[#allocation2 + $0x58] sm:$0xff]
        %v333 = vld [vmem:[#allocation2 + $0x60] sm:$0xff]
        %v334 = vld [vmem:[#allocation2 + $0x68] sm:$0xff]
        %v335 = vld [vmem:[#allocation2 + $0x70] sm:$0xff]
        %v336 = vld [vmem:[#allocation2 + $0x78] sm:$0xff]
        %v337 = vld [vmem:[#allocation2 + $0x80] sm:$0xff]
        %v338 = vld [vmem:[#allocation2 + $0x88] sm:$0xff]
        %v339 = vld [vmem:[#allocation2 + $0x90] sm:$0xff]
        %v340 = vld [vmem:[#allocation2 + $0x98] sm:$0xff]
        %v341 = vld [vmem:[#allocation2 + $0xa0] sm:$0xff]
        %v342 = vld [vmem:[#allocation2 + $0xa8] sm:$0xff]
        %v343 = vld [vmem:[#allocation2 + $0xb0] sm:$0xff]
        %v344 = vld [vmem:[#allocation2 + $0xb8] sm:$0xff]
        %v345 = vld [vmem:[#allocation2 + $0xc0] sm:$0xff]
        %v346 = vld [vmem:[#allocation2 + $0xc8] sm:$0xff]
        %v347 = vld [vmem:[#allocation2 + $0xd0] sm:$0xff]
        %v348 = vld [vmem:[#allocation2 + $0xd8] sm:$0xff]
        %v349 = vld [vmem:[#allocation2 + $0xe0] sm:$0xff]
        %v350 = vld [vmem:[#allocation2 + $0xe8] sm:$0xff]
        %v351 = vld [vmem:[#allocation2 + $0xf0] sm:$0xff]
        %v352 = vld [vmem:[#allocation2 + $0xf8] sm:$0xff]
        %v353 = vld [vmem:[%s272] sm:$0xf]
        %v354 = vld [vmem:[%s272 + $0x4] sm:$0xf]
        %v355 = vld [vmem:[%s272 + $0x8] sm:$0xf]
        %v356 = vld [vmem:[%s272 + $0xc] sm:$0xf]
        %v357 = vld [vmem:[%s272 + $0x10] sm:$0xf]
        %v358 = vld [vmem:[%s272 + $0x14] sm:$0xf]
        %v359 = vld [vmem:[%s272 + $0x18] sm:$0xf]
        %v360 = vld [vmem:[%s272 + $0x1c] sm:$0xf]
        %v361 = vld [vmem:[%s272 + $0x20] sm:$0xf]
        %v362 = vld [vmem:[%s272 + $0x24] sm:$0xf]
        %v363 = vld [vmem:[%s272 + $0x28] sm:$0xf]
        %v364 = vld [vmem:[%s272 + $0x2c] sm:$0xf]
        %v365 = vld [vmem:[%s272 + $0x30] sm:$0xf]
        %v366 = vld [vmem:[%s272 + $0x34] sm:$0xf]
        %v367 = vld [vmem:[%s272 + $0x38] sm:$0xf]
        %v368 = vld [vmem:[%s272 + $0x3c] sm:$0xf]
        %v369 = vld [vmem:[%s272 + $0x40] sm:$0xf]
        %v370 = vld [vmem:[%s272 + $0x44] sm:$0xf]
        %v371 = vld [vmem:[%s272 + $0x48] sm:$0xf]
        %v372 = vld [vmem:[%s272 + $0x4c] sm:$0xf]
        %v373 = vld [vmem:[%s272 + $0x50] sm:$0xf]
        %v374 = vld [vmem:[%s272 + $0x54] sm:$0xf]
        %v375 = vld [vmem:[%s272 + $0x58] sm:$0xf]
        %v376 = vld [vmem:[%s272 + $0x5c] sm:$0xf]
        %v377 = vld [vmem:[%s272 + $0x60] sm:$0xf]
        %v378 = vld [vmem:[%s272 + $0x64] sm:$0xf]
        %v379 = vld [vmem:[%s272 + $0x68] sm:$0xf]
        %v380 = vld [vmem:[%s272 + $0x6c] sm:$0xf]
        %v381 = vld [vmem:[%s272 + $0x70] sm:$0xf]
        %v382 = vld [vmem:[%s272 + $0x74] sm:$0xf]
        %v383 = vld [vmem:[%s272 + $0x78] sm:$0xf]
        %v384 = vld [vmem:[%s272 + $0x7c] sm:$0xf]
        %v385 = vld [vmem:[%s281] sm:$0xf]
        %v386 = vld [vmem:[%s281 + $0x4] sm:$0xf]
        %v387 = vld [vmem:[%s281 + $0x8] sm:$0xf]
        %v388 = vld [vmem:[%s281 + $0xc] sm:$0xf]
        %v421 = vunpack.c.l.b16 %v353
        %v422 = vunpack.c.l.b16 %v354
        %v423 = vunpack.c.l.b16 %v355
        %v424 = vunpack.c.l.b16 %v356
        %v425 = vunpack.c.l.b16 %v357
        %v426 = vunpack.c.l.b16 %v358
        %v427 = vunpack.c.l.b16 %v359
        %v428 = vunpack.c.l.b16 %v360
        %v429 = vunpack.c.l.b16 %v361
        %v430 = vunpack.c.l.b16 %v362
        %v431 = vunpack.c.l.b16 %v363
        %v432 = vunpack.c.l.b16 %v364
        %v433 = vunpack.c.l.b16 %v365
        %v434 = vunpack.c.l.b16 %v366
        %v435 = vunpack.c.l.b16 %v367
        %v436 = vunpack.c.l.b16 %v368
        %v437 = vunpack.c.l.b16 %v369
        %v438 = vunpack.c.l.b16 %v370
        %v439 = vunpack.c.l.b16 %v371
        %v440 = vunpack.c.l.b16 %v372
        %v441 = vunpack.c.l.b16 %v373
        %v442 = vunpack.c.l.b16 %v374
        %v443 = vunpack.c.l.b16 %v375
        %v444 = vunpack.c.l.b16 %v376
        %v445 = vunpack.c.l.b16 %v377
        %v446 = vunpack.c.l.b16 %v378
        %v447 = vunpack.c.l.b16 %v379
        %v448 = vunpack.c.l.b16 %v380
        %v449 = vunpack.c.l.b16 %v381
        %v450 = vunpack.c.l.b16 %v382
        %v451 = vunpack.c.l.b16 %v383
        %v452 = vunpack.c.l.b16 %v384
        %v453 = vpack.c.b16 %v422, %v421
        %v454 = vpack.c.b16 %v424, %v423
        %v455 = vpack.c.b16 %v426, %v425
        %v456 = vpack.c.b16 %v428, %v427
        %v457 = vpack.c.b16 %v430, %v429
        %v458 = vpack.c.b16 %v432, %v431
        %v459 = vpack.c.b16 %v434, %v433
        %v460 = vpack.c.b16 %v436, %v435
        %v461 = vpack.c.b16 %v438, %v437
        %v462 = vpack.c.b16 %v440, %v439
        %v463 = vpack.c.b16 %v442, %v441
        %v464 = vpack.c.b16 %v444, %v443
        %v465 = vpack.c.b16 %v446, %v445
        %v466 = vpack.c.b16 %v448, %v447
        %v467 = vpack.c.b16 %v450, %v449
        %v468 = vpack.c.b16 %v452, %v451
        %v473 = vunpack.c.l.b16 %v385
        %v474 = vunpack.c.l.b16 %v386
        %v475 = vunpack.c.l.b16 %v387
        %v476 = vunpack.c.l.b16 %v388
        %v477 = vpack.c.b16 %v474, %v473
        %v478 = vpack.c.b16 %v476, %v475
        %vm481 = vcmask 261120
        %v483 = vsel %vm481, %v453, 0
        %v486 = vsel %vm481, %v454, 0
        %v489 = vsel %vm481, %v455, 0
        %v492 = vsel %vm481, %v456, 0
        %v495 = vsel %vm481, %v457, 0
        %v498 = vsel %vm481, %v458, 0
        %v501 = vsel %vm481, %v459, 0
        %v504 = vsel %vm481, %v460, 0
        %v507 = vsel %vm481, %v461, 0
        %v510 = vsel %vm481, %v462, 0
        %v513 = vsel %vm481, %v463, 0
        %v516 = vsel %vm481, %v464, 0
        %v519 = vsel %vm481, %v465, 0
        %v522 = vsel %vm481, %v466, 0
        %v525 = vsel %vm481, %v467, 0
        %v528 = vsel %vm481, %v468, 0
        %530 = vmatprep.subr.bf16.mxu0 0
        %531 = vmatpush1.bf16.msra.mxu0 %v477
        %532 = vmatprep.subr.bf16.mxu0 0
        %533 = vmatpush1.bf16.msra.mxu0 %v478
        %534 = vmatprep.subr.bf16.mxu0 0
        %535 = vmatpush1.bf16.msra.mxu0 0
        %536 = vmatprep.subr.bf16.mxu0 0
        %537 = vmatpush1.bf16.msra.mxu0 0
        %538 = vmatprep.subr.bf16.mxu0 0
        %539 = vmatpush1.bf16.msra.mxu0 0
        %540 = vmatprep.subr.bf16.mxu0 0
        %541 = vmatpush1.bf16.msra.mxu0 0
        %542 = vmatprep.subr.bf16.mxu0 0
        %543 = vmatpush1.bf16.msra.mxu0 0
        %544 = vmatprep.subr.bf16.mxu0 0
        %545 = vmatpush1.bf16.msra.mxu0 0
        %546 = vmatprep.subr.bf16.mxu0 0
        %547 = vmatpush1.bf16.msra.mxu0 0
        %548 = vmatprep.subr.bf16.mxu0 0
        %549 = vmatpush1.bf16.msra.mxu0 0
        %550 = vmatprep.subr.bf16.mxu0 0
        %551 = vmatpush1.bf16.msra.mxu0 0
        %552 = vmatprep.subr.bf16.mxu0 0
        %553 = vmatpush1.bf16.msra.mxu0 0
        %554 = vmatprep.subr.bf16.mxu0 0
        %555 = vmatpush1.bf16.msra.mxu0 0
        %556 = vmatprep.subr.bf16.mxu0 0
        %557 = vmatpush1.bf16.msra.mxu0 0
        %558 = vmatprep.subr.bf16.mxu0 0
        %559 = vmatpush1.bf16.msra.mxu0 0
        %560 = vmatprep.subr.bf16.mxu0 0
        %561 = vmatpush1.bf16.msra.mxu0 0
        %562 = vmatprep.mubr.bf16.mxu0 0
        %563 = vmatmul.mubr.bf16.gmra.mrb[0].mxu0 %v483
        %v564 = vpop.f32.mrb[0].mxu0
        %v565 = vadd.f32 0.0, %v564
        %v566 = vpop.f32.mrb[0].mxu0
        %v567 = vpop.f32.mrb[0].mxu0
        %v568 = vadd.f32 0.0, %v567
        %v569 = vpop.f32.mrb[0].mxu0
        %570 = vmatprep.mubr.bf16.mxu0 0
        %571 = vmatmul.mubr.bf16.gmra.mrb[0].mxu0 %v486
        %v572 = vpop.f32.mrb[0].mxu0
        %v573 = vadd.f32 0.0, %v572
        %v574 = vpop.f32.mrb[0].mxu0
        %v575 = vpop.f32.mrb[0].mxu0
        %v576 = vadd.f32 0.0, %v575
        %v577 = vpop.f32.mrb[0].mxu0
        %578 = vmatprep.mubr.bf16.mxu0 0
        %579 = vmatmul.mubr.bf16.gmra.mrb[0].mxu0 %v489
        %v580 = vpop.f32.mrb[0].mxu0
        %v581 = vadd.f32 0.0, %v580
        %v582 = vpop.f32.mrb[0].mxu0
        %v583 = vpop.f32.mrb[0].mxu0
        %v584 = vadd.f32 0.0, %v583
        %v585 = vpop.f32.mrb[0].mxu0
        %586 = vmatprep.mubr.bf16.mxu0 0
        %587 = vmatmul.mubr.bf16.gmra.mrb[0].mxu0 %v492
        %v588 = vpop.f32.mrb[0].mxu0
        %v589 = vadd.f32 0.0, %v588
        %v590 = vpop.f32.mrb[0].mxu0
        %v591 = vpop.f32.mrb[0].mxu0
        %v592 = vadd.f32 0.0, %v591
        %v593 = vpop.f32.mrb[0].mxu0
        %594 = vmatprep.mubr.bf16.mxu0 0
        %595 = vmatmul.mubr.bf16.gmra.mrb[0].mxu0 %v495
        %v596 = vpop.f32.mrb[0].mxu0
        %v597 = vadd.f32 0.0, %v596
        %v598 = vpop.f32.mrb[0].mxu0
        %v599 = vpop.f32.mrb[0].mxu0
        %v600 = vadd.f32 0.0, %v599
        %v601 = vpop.f32.mrb[0].mxu0
        %602 = vmatprep.mubr.bf16.mxu0 0
        %603 = vmatmul.mubr.bf16.gmra.mrb[0].mxu0 %v498
        %v604 = vpop.f32.mrb[0].mxu0
        %v605 = vadd.f32 0.0, %v604
        %v606 = vpop.f32.mrb[0].mxu0
        %v607 = vpop.f32.mrb[0].mxu0
        %v608 = vadd.f32 0.0, %v607
        %v609 = vpop.f32.mrb[0].mxu0
        %610 = vmatprep.mubr.bf16.mxu0 0
        %611 = vmatmul.mubr.bf16.gmra.mrb[0].mxu0 %v501
        %v612 = vpop.f32.mrb[0].mxu0
        %v613 = vadd.f32 0.0, %v612
        %v614 = vpop.f32.mrb[0].mxu0
        %v615 = vpop.f32.mrb[0].mxu0
        %v616 = vadd.f32 0.0, %v615
        %v617 = vpop.f32.mrb[0].mxu0
        %618 = vmatprep.mubr.bf16.mxu0 0
        %619 = vmatmul.mubr.bf16.gmra.mrb[0].mxu0 %v504
        %v620 = vpop.f32.mrb[0].mxu0
        %v621 = vadd.f32 0.0, %v620
        %v622 = vpop.f32.mrb[0].mxu0
        %v623 = vpop.f32.mrb[0].mxu0
        %v624 = vadd.f32 0.0, %v623
        %v625 = vpop.f32.mrb[0].mxu0
        %626 = vmatprep.mubr.bf16.mxu0 0
        %627 = vmatmul.mubr.bf16.gmra.mrb[0].mxu0 %v507
        %v628 = vpop.f32.mrb[0].mxu0
        %v629 = vadd.f32 0.0, %v628
        %v630 = vpop.f32.mrb[0].mxu0
        %v631 = vpop.f32.mrb[0].mxu0
        %v632 = vadd.f32 0.0, %v631
        %v633 = vpop.f32.mrb[0].mxu0
        %634 = vmatprep.mubr.bf16.mxu0 0
        %635 = vmatmul.mubr.bf16.gmra.mrb[0].mxu0 %v510
        %v636 = vpop.f32.mrb[0].mxu0
        %v637 = vadd.f32 0.0, %v636
        %v638 = vpop.f32.mrb[0].mxu0
        %v639 = vpop.f32.mrb[0].mxu0
        %v640 = vadd.f32 0.0, %v639
        %v641 = vpop.f32.mrb[0].mxu0
        %642 = vmatprep.mubr.bf16.mxu0 0
        %643 = vmatmul.mubr.bf16.gmra.mrb[0].mxu0 %v513
        %v644 = vpop.f32.mrb[0].mxu0
        %v645 = vadd.f32 0.0, %v644
        %v646 = vpop.f32.mrb[0].mxu0
        %v647 = vpop.f32.mrb[0].mxu0
        %v648 = vadd.f32 0.0, %v647
        %v649 = vpop.f32.mrb[0].mxu0
        %650 = vmatprep.mubr.bf16.mxu0 0
        %651 = vmatmul.mubr.bf16.gmra.mrb[0].mxu0 %v516
        %v652 = vpop.f32.mrb[0].mxu0
        %v653 = vadd.f32 0.0, %v652
        %v654 = vpop.f32.mrb[0].mxu0
        %v655 = vpop.f32.mrb[0].mxu0
        %v656 = vadd.f32 0.0, %v655
        %v657 = vpop.f32.mrb[0].mxu0
        %658 = vmatprep.mubr.bf16.mxu0 0
        %659 = vmatmul.mubr.bf16.gmra.mrb[0].mxu0 %v519
        %v660 = vpop.f32.mrb[0].mxu0
        %v661 = vadd.f32 0.0, %v660
        %v662 = vpop.f32.mrb[0].mxu0
        %v663 = vpop.f32.mrb[0].mxu0
        %v664 = vadd.f32 0.0, %v663
        %v665 = vpop.f32.mrb[0].mxu0
        %666 = vmatprep.mubr.bf16.mxu0 0
        %667 = vmatmul.mubr.bf16.gmra.mrb[0].mxu0 %v522
        %v668 = vpop.f32.mrb[0].mxu0
        %v669 = vadd.f32 0.0, %v668
        %v670 = vpop.f32.mrb[0].mxu0
        %v671 = vpop.f32.mrb[0].mxu0
        %v672 = vadd.f32 0.0, %v671
        %v673 = vpop.f32.mrb[0].mxu0
        %674 = vmatprep.mubr.bf16.mxu0 0
        %675 = vmatmul.mubr.bf16.gmra.mrb[0].mxu0 %v525
        %v676 = vpop.f32.mrb[0].mxu0
        %v677 = vadd.f32 0.0, %v676
        %v678 = vpop.f32.mrb[0].mxu0
        %v679 = vpop.f32.mrb[0].mxu0
        %v680 = vadd.f32 0.0, %v679
        %v681 = vpop.f32.mrb[0].mxu0
        %682 = vmatprep.mubr.bf16.mxu0 0
        %683 = vmatmul.mubr.bf16.gmra.mrb[0].mxu0 %v528
        %v684 = vpop.f32.mrb[0].mxu0
        %v685 = vadd.f32 0.0, %v684
        %v686 = vpop.f32.mrb[0].mxu0
        %v687 = vpop.f32.mrb[0].mxu0
        %v688 = vadd.f32 0.0, %v687
        %v689 = vpop.f32.mrb[0].mxu0
        %690 = vdwg.mxu0
        %v691 = vadd.f32 %v321, %v565
        %v692 = vadd.f32 %v322, %v568
        %v693 = vadd.f32 %v323, %v573
        %v694 = vadd.f32 %v324, %v576
        %v695 = vadd.f32 %v325, %v581
        %v696 = vadd.f32 %v326, %v584
        %v697 = vadd.f32 %v327, %v589
        %v698 = vadd.f32 %v328, %v592
        %v699 = vadd.f32 %v329, %v597
        %v700 = vadd.f32 %v330, %v600
        %v701 = vadd.f32 %v331, %v605
        %v702 = vadd.f32 %v332, %v608
        %v703 = vadd.f32 %v333, %v613
        %v704 = vadd.f32 %v334, %v616
        %v705 = vadd.f32 %v335, %v621
        %v706 = vadd.f32 %v336, %v624
        %v707 = vadd.f32 %v337, %v629
        %v708 = vadd.f32 %v338, %v632
        %v709 = vadd.f32 %v339, %v637
        %v710 = vadd.f32 %v340, %v640
        %v711 = vadd.f32 %v341, %v645
        %v712 = vadd.f32 %v342, %v648
        %v713 = vadd.f32 %v343, %v653
        %v714 = vadd.f32 %v344, %v656
        %v715 = vadd.f32 %v345, %v661
        %v716 = vadd.f32 %v346, %v664
        %v717 = vadd.f32 %v347, %v669
        %v718 = vadd.f32 %v348, %v672
        %v719 = vadd.f32 %v349, %v677
        %v720 = vadd.f32 %v350, %v680
        %v721 = vadd.f32 %v351, %v685
        %v722 = vadd.f32 %v352, %v688
        %723 = vst [vmem:[#allocation2] sm:$0xff] %v691
        %724 = vst [vmem:[#allocation2 + $0x8] sm:$0xff] %v692
        %725 = vst [vmem:[#allocation2 + $0x10] sm:$0xff] %v693
        %726 = vst [vmem:[#allocation2 + $0x18] sm:$0xff] %v694
        %727 = vst [vmem:[#allocation2 + $0x20] sm:$0xff] %v695
        %728 = vst [vmem:[#allocation2 + $0x28] sm:$0xff] %v696
        %729 = vst [vmem:[#allocation2 + $0x30] sm:$0xff] %v697
        %730 = vst [vmem:[#allocation2 + $0x38] sm:$0xff] %v698
        %731 = vst [vmem:[#allocation2 + $0x40] sm:$0xff] %v699
        %732 = vst [vmem:[#allocation2 + $0x48] sm:$0xff] %v700
        %733 = vst [vmem:[#allocation2 + $0x50] sm:$0xff] %v701
        %734 = vst [vmem:[#allocation2 + $0x58] sm:$0xff] %v702
        %735 = vst [vmem:[#allocation2 + $0x60] sm:$0xff] %v703
        %736 = vst [vmem:[#allocation2 + $0x68] sm:$0xff] %v704
        %737 = vst [vmem:[#allocation2 + $0x70] sm:$0xff] %v705
        %738 = vst [vmem:[#allocation2 + $0x78] sm:$0xff] %v706
        %739 = vst [vmem:[#allocation2 + $0x80] sm:$0xff] %v707
        %740 = vst [vmem:[#allocation2 + $0x88] sm:$0xff] %v708
        %741 = vst [vmem:[#allocation2 + $0x90] sm:$0xff] %v709
        %742 = vst [vmem:[#allocation2 + $0x98] sm:$0xff] %v710
        %743 = vst [vmem:[#allocation2 + $0xa0] sm:$0xff] %v711
        %744 = vst [vmem:[#allocation2 + $0xa8] sm:$0xff] %v712
        %745 = vst [vmem:[#allocation2 + $0xb0] sm:$0xff] %v713
        %746 = vst [vmem:[#allocation2 + $0xb8] sm:$0xff] %v714
        %747 = vst [vmem:[#allocation2 + $0xc0] sm:$0xff] %v715
        %748 = vst [vmem:[#allocation2 + $0xc8] sm:$0xff] %v716
        %749 = vst [vmem:[#allocation2 + $0xd0] sm:$0xff] %v717
        %750 = vst [vmem:[#allocation2 + $0xd8] sm:$0xff] %v718
        %751 = vst [vmem:[#allocation2 + $0xe0] sm:$0xff] %v719
        %752 = vst [vmem:[#allocation2 + $0xe8] sm:$0xff] %v720
        %753 = vst [vmem:[#allocation2 + $0xf0] sm:$0xff] %v721
        %754 = vst [vmem:[#allocation2 + $0xf8] sm:$0xff] %v722
        // Predicated region
        $region33: #{matmul_bn_stats.1} parent=27 // pred_check
          %p755 = pneg %p285
        $region34: #{matmul_bn_stats.1} parent=27 // pred_check_branch
          %757 = sbr.rel (%p755) target = $region36
        $region35: #{matmul_bn_stats.1} parent=27 // pred_region
          %v758 = vld [vmem:[#allocation2] sm:$0xff]
          %v759 = vld [vmem:[#allocation2 + $0x8] sm:$0xff]
          %v760 = vld [vmem:[#allocation2 + $0x10] sm:$0xff]
          %v761 = vld [vmem:[#allocation2 + $0x18] sm:$0xff]
          %v762 = vld [vmem:[#allocation2 + $0x20] sm:$0xff]
          %v763 = vld [vmem:[#allocation2 + $0x28] sm:$0xff]
          %v764 = vld [vmem:[#allocation2 + $0x30] sm:$0xff]
          %v765 = vld [vmem:[#allocation2 + $0x38] sm:$0xff]
          %v766 = vld [vmem:[#allocation2 + $0x40] sm:$0xff]
          %v767 = vld [vmem:[#allocation2 + $0x48] sm:$0xff]
          %v768 = vld [vmem:[#allocation2 + $0x50] sm:$0xff]
          %v769 = vld [vmem:[#allocation2 + $0x58] sm:$0xff]
          %v770 = vld [vmem:[#allocation2 + $0x60] sm:$0xff]
          %v771 = vld [vmem:[#allocation2 + $0x68] sm:$0xff]
          %v772 = vld [vmem:[#allocation2 + $0x70] sm:$0xff]
          %v773 = vld [vmem:[#allocation2 + $0x78] sm:$0xff]
          %v774 = vld [vmem:[#allocation2 + $0x80] sm:$0xff]
          %v775 = vld [vmem:[#allocation2 + $0x88] sm:$0xff]
          %v776 = vld [vmem:[#allocation2 + $0x90] sm:$0xff]
          %v777 = vld [vmem:[#allocation2 + $0x98] sm:$0xff]
          %v778 = vld [vmem:[#allocation2 + $0xa0] sm:$0xff]
          %v779 = vld [vmem:[#allocation2 + $0xa8] sm:$0xff]
          %v780 = vld [vmem:[#allocation2 + $0xb0] sm:$0xff]
          %v781 = vld [vmem:[#allocation2 + $0xb8] sm:$0xff]
          %v782 = vld [vmem:[#allocation2 + $0xc0] sm:$0xff]
          %v783 = vld [vmem:[#allocation2 + $0xc8] sm:$0xff]
          %v784 = vld [vmem:[#allocation2 + $0xd0] sm:$0xff]
          %v785 = vld [vmem:[#allocation2 + $0xd8] sm:$0xff]
          %v786 = vld [vmem:[#allocation2 + $0xe0] sm:$0xff]
          %v787 = vld [vmem:[#allocation2 + $0xe8] sm:$0xff]
          %v788 = vld [vmem:[#allocation2 + $0xf0] sm:$0xff]
          %v789 = vld [vmem:[#allocation2 + $0xf8] sm:$0xff]
          %v790 = vpack.c.bf16 %v759, %v758
          %v791 = vpack.c.bf16 %v761, %v760
          %v792 = vpack.c.bf16 %v763, %v762
          %v793 = vpack.c.bf16 %v765, %v764
          %v794 = vpack.c.bf16 %v767, %v766
          %v795 = vpack.c.bf16 %v769, %v768
          %v796 = vpack.c.bf16 %v771, %v770
          %v797 = vpack.c.bf16 %v773, %v772
          %v798 = vpack.c.bf16 %v775, %v774
          %v799 = vpack.c.bf16 %v777, %v776
          %v800 = vpack.c.bf16 %v779, %v778
          %v801 = vpack.c.bf16 %v781, %v780
          %v802 = vpack.c.bf16 %v783, %v782
          %v803 = vpack.c.bf16 %v785, %v784
          %v804 = vpack.c.bf16 %v787, %v786
          %v805 = vpack.c.bf16 %v789, %v788
          %v822 = vunpack.c.l.b16 %v790
          %v823 = vunpack.c.h.b16 %v790
          %v824 = vunpack.c.l.b16 %v791
          %v825 = vunpack.c.h.b16 %v791
          %v826 = vunpack.c.l.b16 %v792
          %v827 = vunpack.c.h.b16 %v792
          %v828 = vunpack.c.l.b16 %v793
          %v829 = vunpack.c.h.b16 %v793
          %v830 = vunpack.c.l.b16 %v794
          %v831 = vunpack.c.h.b16 %v794
          %v832 = vunpack.c.l.b16 %v795
          %v833 = vunpack.c.h.b16 %v795
          %v834 = vunpack.c.l.b16 %v796
          %v835 = vunpack.c.h.b16 %v796
          %v836 = vunpack.c.l.b16 %v797
          %v837 = vunpack.c.h.b16 %v797
          %v838 = vunpack.c.l.b16 %v798
          %v839 = vunpack.c.h.b16 %v798
          %v840 = vunpack.c.l.b16 %v799
          %v841 = vunpack.c.h.b16 %v799
          %v842 = vunpack.c.l.b16 %v800
          %v843 = vunpack.c.h.b16 %v800
          %v844 = vunpack.c.l.b16 %v801
          %v845 = vunpack.c.h.b16 %v801
          %v846 = vunpack.c.l.b16 %v802
          %v847 = vunpack.c.h.b16 %v802
          %v848 = vunpack.c.l.b16 %v803
          %v849 = vunpack.c.h.b16 %v803
          %v850 = vunpack.c.l.b16 %v804
          %v851 = vunpack.c.h.b16 %v804
          %v852 = vunpack.c.l.b16 %v805
          %v853 = vunpack.c.h.b16 %v805
          %v854 = vpack.c.b16 %v822, %v822
          %v855 = vpack.c.b16 %v823, %v823
          %v856 = vpack.c.b16 %v824, %v824
          %v857 = vpack.c.b16 %v825, %v825
          %v858 = vpack.c.b16 %v826, %v826
          %v859 = vpack.c.b16 %v827, %v827
          %v860 = vpack.c.b16 %v828, %v828
          %v861 = vpack.c.b16 %v829, %v829
          %v862 = vpack.c.b16 %v830, %v830
          %v863 = vpack.c.b16 %v831, %v831
          %v864 = vpack.c.b16 %v832, %v832
          %v865 = vpack.c.b16 %v833, %v833
          %v866 = vpack.c.b16 %v834, %v834
          %v867 = vpack.c.b16 %v835, %v835
          %v868 = vpack.c.b16 %v836, %v836
          %v869 = vpack.c.b16 %v837, %v837
          %v870 = vpack.c.b16 %v838, %v838
          %v871 = vpack.c.b16 %v839, %v839
          %v872 = vpack.c.b16 %v840, %v840
          %v873 = vpack.c.b16 %v841, %v841
          %v874 = vpack.c.b16 %v842, %v842
          %v875 = vpack.c.b16 %v843, %v843
          %v876 = vpack.c.b16 %v844, %v844
          %v877 = vpack.c.b16 %v845, %v845
          %v878 = vpack.c.b16 %v846, %v846
          %v879 = vpack.c.b16 %v847, %v847
          %v880 = vpack.c.b16 %v848, %v848
          %v881 = vpack.c.b16 %v849, %v849
          %v882 = vpack.c.b16 %v850, %v850
          %v883 = vpack.c.b16 %v851, %v851
          %v884 = vpack.c.b16 %v852, %v852
          %v885 = vpack.c.b16 %v853, %v853
          %918 = vst [vmem:[%s252] sm:$0xf] %v854
          %919 = vst [vmem:[%s252 + $0x4] sm:$0xf] %v855
          %920 = vst [vmem:[%s252 + $0x8] sm:$0xf] %v856
          %921 = vst [vmem:[%s252 + $0xc] sm:$0xf] %v857
          %922 = vst [vmem:[%s252 + $0x10] sm:$0xf] %v858
          %923 = vst [vmem:[%s252 + $0x14] sm:$0xf] %v859
          %924 = vst [vmem:[%s252 + $0x18] sm:$0xf] %v860
          %925 = vst [vmem:[%s252 + $0x1c] sm:$0xf] %v861
          %926 = vst [vmem:[%s252 + $0x20] sm:$0xf] %v862
          %927 = vst [vmem:[%s252 + $0x24] sm:$0xf] %v863
          %928 = vst [vmem:[%s252 + $0x28] sm:$0xf] %v864
          %929 = vst [vmem:[%s252 + $0x2c] sm:$0xf] %v865
          %930 = vst [vmem:[%s252 + $0x30] sm:$0xf] %v866
          %931 = vst [vmem:[%s252 + $0x34] sm:$0xf] %v867
          %932 = vst [vmem:[%s252 + $0x38] sm:$0xf] %v868
          %933 = vst [vmem:[%s252 + $0x3c] sm:$0xf] %v869
          %934 = vst [vmem:[%s252 + $0x40] sm:$0xf] %v870
          %935 = vst [vmem:[%s252 + $0x44] sm:$0xf] %v871
          %936 = vst [vmem:[%s252 + $0x48] sm:$0xf] %v872
          %937 = vst [vmem:[%s252 + $0x4c] sm:$0xf] %v873
          %938 = vst [vmem:[%s252 + $0x50] sm:$0xf] %v874
          %939 = vst [vmem:[%s252 + $0x54] sm:$0xf] %v875
          %940 = vst [vmem:[%s252 + $0x58] sm:$0xf] %v876
          %941 = vst [vmem:[%s252 + $0x5c] sm:$0xf] %v877
          %942 = vst [vmem:[%s252 + $0x60] sm:$0xf] %v878
          %943 = vst [vmem:[%s252 + $0x64] sm:$0xf] %v879
          %944 = vst [vmem:[%s252 + $0x68] sm:$0xf] %v880
          %945 = vst [vmem:[%s252 + $0x6c] sm:$0xf] %v881
          %946 = vst [vmem:[%s252 + $0x70] sm:$0xf] %v882
          %947 = vst [vmem:[%s252 + $0x74] sm:$0xf] %v883
          %948 = vst [vmem:[%s252 + $0x78] sm:$0xf] %v884
          %949 = vst [vmem:[%s252 + $0x7c] sm:$0xf] %v885
          %v950 = vadd.f32 %v758, %v759
          %v951 = vadd.f32 %v950, %v760
          %v952 = vadd.f32 %v951, %v761
          %v953 = vadd.f32 %v952, %v762
          %v954 = vadd.f32 %v953, %v763
          %v955 = vadd.f32 %v954, %v764
          %v956 = vadd.f32 %v955, %v765
          %v957 = vadd.f32 %v956, %v766
          %v958 = vadd.f32 %v957, %v767
          %v959 = vadd.f32 %v958, %v768
          %v960 = vadd.f32 %v959, %v769
          %v961 = vadd.f32 %v960, %v770
          %v962 = vadd.f32 %v961, %v771
          %v963 = vadd.f32 %v962, %v772
          %v964 = vadd.f32 %v963, %v773
          %v965 = vadd.f32 %v964, %v774
          %v966 = vadd.f32 %v965, %v775
          %v967 = vadd.f32 %v966, %v776
          %v968 = vadd.f32 %v967, %v777
          %v969 = vadd.f32 %v968, %v778
          %v970 = vadd.f32 %v969, %v779
          %v971 = vadd.f32 %v970, %v780
          %v972 = vadd.f32 %v971, %v781
          %v973 = vadd.f32 %v972, %v782
          %v974 = vadd.f32 %v973, %v783
          %v975 = vadd.f32 %v974, %v784
          %v976 = vadd.f32 %v975, %v785
          %v977 = vadd.f32 %v976, %v786
          %v978 = vadd.f32 %v977, %v787
          %v979 = vadd.f32 %v978, %v788
          %v980 = vadd.f32 %v979, %v789
          %v981 = vrot.slane %v980, 4
          %v982 = vadd.f32 %v980, %v981
          %v983 = vrot.slane %v982, 2
          %v984 = vadd.f32 %v982, %v983
          %v985 = vrot.slane %v984, 1
          %v986 = vadd.f32 %v984, %v985
          %987 = vst [vmem:[%s258] sm:$0x1] %v986
          %v988 = vmul.f32 %v758, %v758
          %v989 = vmul.f32 %v759, %v759
          %v990 = vmul.f32 %v760, %v760
          %v991 = vmul.f32 %v761, %v761
          %v992 = vmul.f32 %v762, %v762
          %v993 = vmul.f32 %v763, %v763
          %v994 = vmul.f32 %v764, %v764
          %v995 = vmul.f32 %v765, %v765
          %v996 = vmul.f32 %v766, %v766
          %v997 = vmul.f32 %v767, %v767
          %v998 = vmul.f32 %v768, %v768
          %v999 = vmul.f32 %v769, %v769
          %v1000 = vmul.f32 %v770, %v770
          %v1001 = vmul.f32 %v771, %v771
          %v1002 = vmul.f32 %v772, %v772
          %v1003 = vmul.f32 %v773, %v773
          %v1004 = vmul.f32 %v774, %v774
          %v1005 = vmul.f32 %v775, %v775
          %v1006 = vmul.f32 %v776, %v776
          %v1007 = vmul.f32 %v777, %v777
          %v1008 = vmul.f32 %v778, %v778
          %v1009 = vmul.f32 %v779, %v779
          %v1010 = vmul.f32 %v780, %v780
          %v1011 = vmul.f32 %v781, %v781
          %v1012 = vmul.f32 %v782, %v782
          %v1013 = vmul.f32 %v783, %v783
          %v1014 = vmul.f32 %v784, %v784
          %v1015 = vmul.f32 %v785, %v785
          %v1016 = vmul.f32 %v786, %v786
          %v1017 = vmul.f32 %v787, %v787
          %v1018 = vmul.f32 %v788, %v788
          %v1019 = vmul.f32 %v789, %v789
          %v1020 = vadd.f32 %v988, %v989
          %v1021 = vadd.f32 %v1020, %v990
          %v1022 = vadd.f32 %v1021, %v991
          %v1023 = vadd.f32 %v1022, %v992
          %v1024 = vadd.f32 %v1023, %v993
          %v1025 = vadd.f32 %v1024, %v994
          %v1026 = vadd.f32 %v1025, %v995
          %v1027 = vadd.f32 %v1026, %v996
          %v1028 = vadd.f32 %v1027, %v997
          %v1029 = vadd.f32 %v1028, %v998
          %v1030 = vadd.f32 %v1029, %v999
          %v1031 = vadd.f32 %v1030, %v1000
          %v1032 = vadd.f32 %v1031, %v1001
          %v1033 = vadd.f32 %v1032, %v1002
          %v1034 = vadd.f32 %v1033, %v1003
          %v1035 = vadd.f32 %v1034, %v1004
          %v1036 = vadd.f32 %v1035, %v1005
          %v1037 = vadd.f32 %v1036, %v1006
          %v1038 = vadd.f32 %v1037, %v1007
          %v1039 = vadd.f32 %v1038, %v1008
          %v1040 = vadd.f32 %v1039, %v1009
          %v1041 = vadd.f32 %v1040, %v1010
          %v1042 = vadd.f32 %v1041, %v1011
          %v1043 = vadd.f32 %v1042, %v1012
          %v1044 = vadd.f32 %v1043, %v1013
          %v1045 = vadd.f32 %v1044, %v1014
          %v1046 = vadd.f32 %v1045, %v1015
          %v1047 = vadd.f32 %v1046, %v1016
          %v1048 = vadd.f32 %v1047, %v1017
          %v1049 = vadd.f32 %v1048, %v1018
          %v1050 = vadd.f32 %v1049, %v1019
          %v1051 = vrot.slane %v1050, 4
          %v1052 = vadd.f32 %v1050, %v1051
          %v1053 = vrot.slane %v1052, 2
          %v1054 = vadd.f32 %v1052, %v1053
          %v1055 = vrot.slane %v1054, 1
          %v1056 = vadd.f32 %v1054, %v1055
          %1057 = vst [vmem:[%s264] sm:$0x1] %v1056
        $region36: #{matmul_bn_stats.1} parent=27 // pred_fallthru
          _
        %s1058 = sand.u32 %s107, 1
        %s1059 = scalar_lea.sflag [#allocation4], %s1058
        %s1060 = sand.u32 %s107, 1
        %s1061 = smul.addr %s1060, 128
        %s1062 = scalar_lea.vmem [#allocation3], %s1061
        %s1063 = sand.u32 %s22, 1
        %s1064 = scalar_lea.sflag [#allocation6], %s1063
        %s1065 = sand.u32 %s135, 1
        %s1066 = scalar_lea.vmem [#allocation5], %s1065
        %s1067 = sand.u32 %s22, 1
        %s1068 = scalar_lea.sflag [#allocation6], %s1067
        %s1069 = sand.u32 %s163, 1
        %s1070 = scalar_lea.vmem [#allocation7], %s1069
        // Predicated region
        $region37: #{matmul_bn_stats.1} parent=27 // pred_check
          %p1071 = pneg %p117
        $region38: #{matmul_bn_stats.1} parent=27 // pred_check_branch
          %1073 = sbr.rel (%p1071) target = $region40
        $region39: #{matmul_bn_stats.1} parent=27 // pred_region
          %s1074 = smul.u32 32, %s27
          %s1076 = ssub.s32 2048, 2048
          %1077 = vsyncadd %s1059, %s1076
          %s1078 = sadd.s32 %s28, %s1074
          %s1079 = smul.addr %s1078, 64
          %s1080 = scalar_lea.hbm %s2, %s1079
          %s1081 = sshll.u32 %s1062, 4
          %s1082 = int_to_ptr.vmem [resolvable:$true] %s1081
          %1087 = dma.vmem_to_hbm [thread:$0]  %s1082, 2048, %s1080, %s1059, 64, 64, 4
        $region40: #{matmul_bn_stats.1} parent=27 // pred_fallthru
          _
        // Predicated region
        $region41: #{matmul_bn_stats.1} parent=27 // pred_check
          %p1088 = pneg %p145
        $region42: #{matmul_bn_stats.1} parent=27 // pred_check_branch
          %1090 = sbr.rel (%p1088) target = $region44
        $region43: #{matmul_bn_stats.1} parent=27 // pred_region
          %s1092 = ssub.s32 16, 16
          %1093 = vsyncadd %s1064, %s1092
          %s1094 = sadd.s32 %s28, %s27
          %s1095 = smul.addr %s1094, 16
          %s1096 = scalar_lea.hbm %s3, %s1095
          %s1098 = sshll.u32 %s1066, 4
          %s1099 = int_to_ptr.vmem [resolvable:$true] %s1098
          %1101 = dma.vmem_to_hbm [thread:$0]  %s1099, 16, %s1096, %s1064
        $region44: #{matmul_bn_stats.1} parent=27 // pred_fallthru
          _
        // Predicated region
        $region45: #{matmul_bn_stats.1} parent=27 // pred_check
          %p1102 = pneg %p173
        $region46: #{matmul_bn_stats.1} parent=27 // pred_check_branch
          %1104 = sbr.rel (%p1102) target = $region48
        $region47: #{matmul_bn_stats.1} parent=27 // pred_region
          %s1106 = ssub.s32 16, 16
          %1107 = vsyncadd %s1068, %s1106
          %s1108 = sadd.s32 %s28, %s27
          %s1109 = smul.addr %s1108, 16
          %s1110 = scalar_lea.hbm %s4, %s1109
          %s1112 = sshll.u32 %s1070, 4
          %s1113 = int_to_ptr.vmem [resolvable:$true] %s1112
          %1115 = dma.vmem_to_hbm [thread:$0]  %s1113, 16, %s1110, %s1068
        $region48: #{matmul_bn_stats.1} parent=27 // pred_fallthru
          _
      $region28: #{matmul_bn_stats.1} parent=5 // pred_fallthru
        _
      %p1116 = scmp.le.s32.totalorder 2, %s17
      // Predicated region
      $region49: #{matmul_bn_stats.1} parent=5 // pred_check
        %p1117 = pneg %p1116
      $region50: #{matmul_bn_stats.1} parent=5 // pred_check_branch
        %1119 = sbr.rel (%p1117) target = $region52
      $region51: #{matmul_bn_stats.1} parent=5 // pred_region
        %s1120 = ssub.s32 %s17, 2
        // Predicated region
        $region53: #{matmul_bn_stats.1} parent=51 // pred_check
          %p1121 = pneg %p123
        $region54: #{matmul_bn_stats.1} parent=51 // pred_check_branch
          %1123 = sbr.rel (%p1121) target = $region56
        $region55: #{matmul_bn_stats.1} parent=51 // pred_region
          %s1124 = sand.u32 %s108, 1
          %s1125 = scalar_lea.sflag [#allocation4], %s1124
          %s1126 = sand.u32 %s108, 1
          %s1127 = smul.addr %s1126, 128
          %s1128 = scalar_lea.vmem [#allocation3], %s1127
          %1129 = dma.done %s1125, 2048
        $region56: #{matmul_bn_stats.1} parent=51 // pred_fallthru
          _
        // Predicated region
        $region57: #{matmul_bn_stats.1} parent=51 // pred_check
          %p1130 = pneg %p151
        $region58: #{matmul_bn_stats.1} parent=51 // pred_check_branch
          %1132 = sbr.rel (%p1130) target = $region60
        $region59: #{matmul_bn_stats.1} parent=51 // pred_region
          %s1133 = sand.u32 %s23, 1
          %s1134 = scalar_lea.sflag [#allocation6], %s1133
          %s1135 = sand.u32 %s136, 1
          %s1136 = scalar_lea.vmem [#allocation5], %s1135
          %1137 = dma.done %s1134, 16
        $region60: #{matmul_bn_stats.1} parent=51 // pred_fallthru
          _
        // Predicated region
        $region61: #{matmul_bn_stats.1} parent=51 // pred_check
          %p1138 = pneg %p179
        $region62: #{matmul_bn_stats.1} parent=51 // pred_check_branch
          %1140 = sbr.rel (%p1138) target = $region64
        $region63: #{matmul_bn_stats.1} parent=51 // pred_region
          %s1141 = sand.u32 %s23, 1
          %s1142 = scalar_lea.sflag [#allocation6], %s1141
          %s1143 = sand.u32 %s164, 1
          %s1144 = scalar_lea.vmem [#allocation7], %s1143
          %1145 = dma.done %s1142, 16
        $region64: #{matmul_bn_stats.1} parent=51 // pred_fallthru
          _
      $region52: #{matmul_bn_stats.1} parent=5 // pred_fallthru
        _
    $region6: #{matmul_bn_stats.1} parent=1 // loop_footer
      %s21 = sadd.s32 1, %s17
    $region7: #{matmul_bn_stats.1} parent=1 // loop_footer_branch
      %16 = sbr.rel target = $region3
    $region8: #{matmul_bn_stats.1} parent=1 // loop_exit
      _
    %1146 = vsyncpa [#allocation4], 1
    %s1147 = scalar_lea.sflag [#allocation4], 1
    %1148 = vsyncpa %s1147, 1
    %1149 = vsyncpa [#allocation6], 1
    %s1150 = scalar_lea.sflag [#allocation6], 1
    %1151 = vsyncpa %s1150, 1

</llo_original>
